<compile_context>
chip_gen: v6e
topology: v6e:2x2x1
jax: 0.10.0
libtpu: 0.0.40
codegen_flags: <defaults>
</compile_context>

<pallas_src>
import jax
import jax.numpy as jnp
from jax.experimental import pallas as pl
from jax.experimental.pallas import tpu as pltpu

EPS = 1e-5
NEG_SLOPE = 0.2
STATS_LANES = 128  # lane-dense stats block; column 0 = sum, column 1 = sum of squares


def _round_up(a, b):
    return ((a + b - 1) // b) * b


def conv_stats_kernel(w_ref, p_ref, y_ref, stats_ref):
    # [C, K] @ [K, TILE_M] -> [C, TILE_M] on the MXU, f32 accumulation.
    y = jnp.dot(w_ref[...], p_ref[...], preferred_element_type=jnp.float32)
    y_ref[...] = y

    # Per-tile BatchNorm partials (zero-padded M columns contribute exactly 0).
    s1 = jnp.sum(y, axis=1, keepdims=True)        # [C, 1]
    s2 = jnp.sum(y * y, axis=1, keepdims=True)    # [C, 1]
    c = y.shape[0]
    lane = jax.lax.broadcasted_iota(jnp.int32, (c, STATS_LANES), 1)
    stats = jnp.where(lane == 0, s1, 0.0) + jnp.where(lane == 1, s2, 0.0)
    stats_ref[...] = stats[None]                  # [1, C, STATS_LANES]


def bn_act_kernel(y_ref, scale_ref, shift_ref, o_ref):
    # Folded BN affine (scale/shift) + LeakyReLU(0.2) as a single maximum.
    z = y_ref[...] * scale_ref[...] + shift_ref[...]
    o_ref[...] = jnp.maximum(z, NEG_SLOPE * z)


def conv_block_forward(x, weight, bias, gamma, beta, kernel_size, *,
                       tile_m=512, compute_dtype=jnp.bfloat16):
    """x: [N, Cin, H, W] (NCHW).  weight: [Cout, Cin, k, k] (torch OIHW layout)."""
    # Conv bias is exactly cancelled by the training-mode BN mean subtraction.
    del bias
    n, cin, h, w = x.shape
    cout = weight.shape[0]
    k = kernel_size
    p = k // 2

    # ReflectionPad2d — host-side glue.
    xp = jnp.pad(x, ((0, 0), (0, 0), (p, p), (p, p)), mode="reflect")

    # im2col: K ordered (cin, ky, kx) to match torch's OIHW weight flattening.
    # TODO(synk): fuse the patch extraction into the kernel (halo-row DMA over H)
    # to cut the k*k HBM read blow-up; kept as wrapper-side im2col here.
    cols = [xp[:, :, dy:dy + h, dx:dx + w] for dy in range(k) for dx in range(k)]
    patches = jnp.stack(cols, axis=2)                          # [N, Cin, k*k, H, W]
    patches = patches.reshape(n, cin * k * k, h, w)            # [N, K, H, W]
    patches = patches.transpose(0, 2, 3, 1).reshape(n * h * w, cin * k * k)  # [M, K]

    kk = cin * k * k
    m = n * h * w

    k_pad = _round_up(kk, 8)                    # sublane alignment for the contraction
    c_pad = _round_up(cout, 8)                  # sublane alignment for channels
    tile_m = max(128, _round_up(tile_m, 128))   # lane-dense M tiles
    m_pad = _round_up(m, tile_m)
    num_tiles = m_pad // tile_m

    # Transposed, padded, bf16 operands: [K, M] patches and [C, K] weights.
    p_t = jnp.pad(patches, ((0, m_pad - m), (0, k_pad - kk))).T.astype(compute_dtype)
    w_t = jnp.pad(weight.reshape(cout, kk),
                  ((0, c_pad - cout), (0, k_pad - kk))).astype(compute_dtype)

    # ---- Pass 1: tiled conv matmul + per-tile BN partial statistics ----------
    y_t, stats = pl.pallas_call(
        conv_stats_kernel,
        out_shape=(
            jax.ShapeDtypeStruct((c_pad, m_pad), jnp.float32),
            jax.ShapeDtypeStruct((num_tiles, c_pad, STATS_LANES), jnp.float32),
        ),
        grid=(num_tiles,),
        in_specs=[
            pl.BlockSpec((c_pad, k_pad), lambda i: (0, 0)),    # weights (replicated)
            pl.BlockSpec((k_pad, tile_m), lambda i: (0, i)),   # patch tile
        ],
        out_specs=(
            pl.BlockSpec((c_pad, tile_m), lambda i: (0, i)),   # conv output tile
            pl.BlockSpec((1, c_pad, STATS_LANES), lambda i: (i, 0, 0)),
        ),
        compiler_params=pltpu.CompilerParams(dimension_semantics=("parallel",)),
    )(w_t, p_t)

    # ---- Tiny cross-tile reduction + BN affine fold (plain JAX) --------------
    s1 = jnp.sum(stats[:, :, 0], axis=0)        # [C] sum over all real rows
    s2 = jnp.sum(stats[:, :, 1], axis=0)        # [C] sum of squares
    mean = s1 / m                               # divide by the *real* row count
    var = jnp.maximum(s2 / m - mean * mean, 0.0)
    gamma_p = jnp.pad(gamma.astype(jnp.float32), (0, c_pad - cout))
    beta_p = jnp.pad(beta.astype(jnp.float32), (0, c_pad - cout))
    scale = gamma_p * jax.lax.rsqrt(var + EPS)
    shift = beta_p - mean * scale
    scale = scale.reshape(c_pad, 1).astype(jnp.float32)
    shift = shift.reshape(c_pad, 1).astype(jnp.float32)

    # ---- Pass 2: tiled normalize (scale/shift) + LeakyReLU --------------------
    out_t = pl.pallas_call(
        bn_act_kernel,
        out_shape=jax.ShapeDtypeStruct((c_pad, m_pad), jnp.float32),
        grid=(num_tiles,),
        in_specs=[
            pl.BlockSpec((c_pad, tile_m), lambda i: (0, i)),
            pl.BlockSpec((c_pad, 1), lambda i: (0, 0)),
            pl.BlockSpec((c_pad, 1), lambda i: (0, 0)),
        ],
        out_specs=pl.BlockSpec((c_pad, tile_m), lambda i: (0, i)),
        compiler_params=pltpu.CompilerParams(dimension_semantics=("parallel",)),
    )(y_t, scale, shift)

    # Strip padding and go back to NCHW.
    out = out_t[:cout, :m].reshape(cout, n, h, w)
    return jnp.transpose(out, (1, 0, 2, 3))


def reference_forward(x, weight, bias, gamma, beta, kernel_size):
    """Pure-JAX reference (independent of the Pallas path)."""
    p = kernel_size // 2
    xp = jnp.pad(x, ((0, 0), (0, 0), (p, p), (p, p)), mode="reflect")
    y = jax.lax.conv_general_dilated(
        xp, weight, window_strides=(1, 1), padding="VALID",
        dimension_numbers=("NCHW", "OIHW", "NCHW"))
    y = y + bias[None, :, None, None]
    mean = jnp.mean(y, axis=(0, 2, 3), keepdims=True)
    var = jnp.mean((y - mean) ** 2, axis=(0, 2, 3), keepdims=True)
    y = (y - mean) * jax.lax.rsqrt(var + EPS)
    y = y * gamma[None, :, None, None] + beta[None, :, None, None]
    return jnp.where(y >= 0, y, NEG_SLOPE * y)


if __name__ == "__main__":
    # Small deterministic setup consistent with ConvBlock(4, 8, 3).
    N, CIN, COUT, K, HW = 2, 4, 8, 3, 16

    key = jax.random.PRNGKey(0)
    kx, kw, kb = jax.random.split(key, 3)

    x = jax.random.normal(kx, (N, CIN, HW, HW), dtype=jnp.float32)

    # Synthetic parameters with nn.Conv2d / nn.BatchNorm2d shapes; gamma/beta made
    # slightly non-trivial to exercise the folded-affine path.
    fan_in = CIN * K * K
    bound = float(fan_in) ** -0.5
    weight = jax.random.uniform(kw, (COUT, CIN, K, K), jnp.float32, -bound, bound)
    bias = jax.random.uniform(kb, (COUT,), jnp.float32, -bound, bound)
    gamma = jnp.linspace(0.8, 1.2, COUT, dtype=jnp.float32)
    beta = jnp.linspace(-0.1, 0.1, COUT, dtype=jnp.float32)

    # tile_m=128 so the demo exercises a multi-tile grid (M = 2*16*16 = 512 -> 4 tiles).
    out = conv_block_forward(x, weight, bias, gamma, beta, K, tile_m=128)
    out = jax.block_until_ready(out)

    ref = reference_forward(x, weight, bias, gamma, beta, K)
    assert out.shape == (N, COUT, HW, HW)
    # bf16 matmul operands (f32 accumulation) introduce ~1e-2-level differences on
    # the O(1) normalized outputs; tolerance chosen accordingly.
    assert jnp.allclose(out, ref, atol=5e-2, rtol=5e-2), "mismatch vs reference"

    print("KERNEL_OK")
</pallas_src>

<mosaic_0001>
module attributes {stable_mosaic.version = 11 : i64} {
  func.func @conv_stats_kernel(%arg0: i32, %arg1: memref<8x40xbf16, #tpu.memory_space<vmem>>, %arg2: memref<40x128xbf16, #tpu.memory_space<vmem>>, %arg3: memref<8x128xf32, #tpu.memory_space<vmem>>, %arg4: memref<1x8x128xf32, #tpu.memory_space<vmem>>) attributes {dimension_semantics = [#tpu.dimension_semantics<parallel>], iteration_bounds = array<i64: 4>, scalar_prefetch = 0 : i64, scratch_operands = 0 : i64, tpu.core_type = #tpu.core_type<tc>, window_params = [{pipeline_mode = #tpu.pipeline_mode<synchronous>, transform_indices = @transform_0, window_bounds = array<i64: 8, 40>}, {transform_indices = @transform_1, window_bounds = array<i64: 40, 128>}, {transform_indices = @transform_2, window_bounds = array<i64: 8, 128>}, {transform_indices = @transform_3, window_bounds = array<i64: 1, 8, 128>}]} {
    %c0 = arith.constant 0 : index
    %c0_0 = arith.constant 0 : index
    %0 = vector.load %arg1[%c0, %c0_0] : memref<8x40xbf16, #tpu.memory_space<vmem>>, vector<8x40xbf16>
    %c0_1 = arith.constant 0 : index
    %c0_2 = arith.constant 0 : index
    %1 = vector.load %arg2[%c0_1, %c0_2] : memref<40x128xbf16, #tpu.memory_space<vmem>>, vector<40x128xbf16>
    %cst = arith.constant dense<0.000000e+00> : vector<8x128xf32>
    %2 = tpu.matmul %0, %1, %cst {dimension_numbers = #tpu.dot_dimension_numbers<[1], [0], [0], [1], [0, 0, 1, 1], [], []>} : vector<8x40xbf16>, vector<40x128xbf16>, vector<8x128xf32> -> vector<8x128xf32>
    %c0_3 = arith.constant 0 : index
    %c0_4 = arith.constant 0 : index
    %3 = vector.load %arg3[%c0_3, %c0_4] : memref<8x128xf32, #tpu.memory_space<vmem>>, vector<8x128xf32>
    tpu.vector_store %arg3[%c0_3, %c0_4], %2 {strides = array<i32>} : memref<8x128xf32, #tpu.memory_space<vmem>>, vector<8x128xf32>,
    %cst_5 = arith.constant dense<0.000000e+00> : vector<8xf32>
    %4 = vector.multi_reduction <add>, %2, %cst_5 [1] : vector<8x128xf32> to vector<8xf32>
    %5 = vector.shape_cast %4 : vector<8xf32> to vector<8x1xf32>
    %6 = arith.mulf %2, %2 : vector<8x128xf32>
    %cst_6 = arith.constant dense<0.000000e+00> : vector<8xf32>
    %7 = vector.multi_reduction <add>, %6, %cst_6 [1] : vector<8x128xf32> to vector<8xf32>
    %8 = vector.shape_cast %7 : vector<8xf32> to vector<8x1xf32>
    %9 = tpu.iota {dimensions = array<i32: 1>} : vector<8x128xi32>
    %c0_i32 = arith.constant 0 : i32
    %10 = vector.broadcast %c0_i32 : i32 to vector<8x128xi32>
    %11 = arith.cmpi eq, %9, %10 : vector<8x128xi32>
    %cst_7 = arith.constant 0.000000e+00 : f32
    %12 = vector.shape_cast %5 : vector<8x1xf32> to vector<8x1xf32>
    %13 = vector.broadcast %12 : vector<8x1xf32> to vector<8x128xf32>
    %14 = vector.broadcast %cst_7 : f32 to vector<8x128xf32>
    %15 = arith.select %11, %13, %14 : vector<8x128xi1>, vector<8x128xf32>
    %c1_i32 = arith.constant 1 : i32
    %16 = vector.broadcast %c1_i32 : i32 to vector<8x128xi32>
    %17 = arith.cmpi eq, %9, %16 : vector<8x128xi32>
    %cst_8 = arith.constant 0.000000e+00 : f32
    %18 = vector.shape_cast %8 : vector<8x1xf32> to vector<8x1xf32>
    %19 = vector.broadcast %18 : vector<8x1xf32> to vector<8x128xf32>
    %20 = vector.broadcast %cst_8 : f32 to vector<8x128xf32>
    %21 = arith.select %17, %19, %20 : vector<8x128xi1>, vector<8x128xf32>
    %22 = arith.addf %15, %21 : vector<8x128xf32>
    %23 = vector.shape_cast %22 : vector<8x128xf32> to vector<1x8x128xf32>
    %c0_9 = arith.constant 0 : index
    %c0_10 = arith.constant 0 : index
    %c0_11 = arith.constant 0 : index
    %24 = vector.load %arg4[%c0_9, %c0_10, %c0_11] : memref<1x8x128xf32, #tpu.memory_space<vmem>>, vector<1x8x128xf32>
    tpu.vector_store %arg4[%c0_9, %c0_10, %c0_11], %23 {strides = array<i32>} : memref<1x8x128xf32, #tpu.memory_space<vmem>>, vector<1x8x128xf32>,
    return
  }
  func.func @transform_0(%arg0: i32) -> (i32, i32) {
    %c0_i32 = arith.constant 0 : i32
    %c0_i32_0 = arith.constant 0 : i32
    %c0_i32_1 = arith.constant 0 : i32
    return %c0_i32, %c0_i32_0 : i32, i32
  }
  func.func @transform_1(%arg0: i32) -> (i32, i32) {
    %c0_i32 = arith.constant 0 : i32
    %c0_i32_0 = arith.constant 0 : i32
    return %c0_i32, %arg0 : i32, i32
  }
  func.func @transform_2(%arg0: i32) -> (i32, i32) {
    %c0_i32 = arith.constant 0 : i32
    %c0_i32_0 = arith.constant 0 : i32
    return %c0_i32, %arg0 : i32, i32
  }
  func.func @transform_3(%arg0: i32) -> (i32, i32, i32) {
    %c0_i32 = arith.constant 0 : i32
    %c0_i32_0 = arith.constant 0 : i32
    %c0_i32_1 = arith.constant 0 : i32
    return %arg0, %c0_i32, %c0_i32_0 : i32, i32, i32
  }
}

</mosaic_0001>

<llo_original>
// kernel: tpu_custom_call.1
$region0: #{tpu_custom_call.1}
  #allocation0 [shape = 'u32[]', space=smem, size = 0x4, offset = 0x4, fixed_abs, tag = 'smem constant byte address 0x4 - core index']
  #allocation1 [shape = 'u32[144,128]{1,0:T(1,128)}', space=vmem, size = 0x12000, scoped, tag = 'internal scratch']
  %s0 = inlined_call_operand.hbm [shape: bf16[8,40], index: 0, kind: input, shape index: {}]
  %s1 = inlined_call_operand.hbm [shape: bf16[40,512], index: 1, kind: input, shape index: {}]
  %s2 = inlined_call_operand.hbm [shape: f32[8,512], index: 2, kind: output, shape index: {0}]
  %s3 = inlined_call_operand.hbm [shape: f32[4,8,128], index: 3, kind: output, shape index: {1}]
  %4 = xla_tuple %s2, %s3
  %s5 = sld [smem:[#allocation0]]
  $region57: #{tpu_custom_call.1} parent=0
    _
  %s7 = ssub.s32 1, %s5
  %s8 = scalar_select 0, %s7, %s5
  $region1: #{tpu_custom_call.1} parent=0
    #allocation2 [shape = 'u8[2048]{0}', space=vmem, size = 0x800, scoped, tag = 'input window, operand 0, single buffered']
    #allocation3 [shape = 's32[2]{0}', space=sflag, size = 0x8, scoped, tag = 'scoped memory for tpu_custom_call.1']
    #allocation4 [shape = 's32[2]{0}', space=sflag, size = 0x8, scoped, tag = 'scoped memory for tpu_custom_call.1']
    #allocation5 [shape = 'u8[20480]{0}', space=vmem, size = 0x5000, scoped, tag = 'input window, operand 1']
    #allocation6 [shape = 's32[2]{0}', space=sflag, size = 0x8, scoped, tag = 'scoped memory for tpu_custom_call.1']
    #allocation7 [shape = 'u8[8192]{0}', space=vmem, size = 0x2000, scoped, tag = 'output window, operand 0']
    #allocation8 [shape = 'u8[8192]{0}', space=vmem, size = 0x2000, scoped, tag = 'output window, operand 1']
    #allocation9 [shape = 's32[2]{0}', space=sflag, size = 0x8, scoped, tag = 'scoped memory for tpu_custom_call.1']
    %9 = vsyncpa [#allocation3], 0
    %10 = vsyncpa [#allocation6], 0
    %s11 = scalar_lea.sflag [#allocation6], 1
    %12 = vsyncpa %s11, 0
    %13 = vsyncpa [#allocation4], 0
    %s14 = scalar_lea.sflag [#allocation4], 1
    %15 = vsyncpa %s14, 0
    %16 = vsyncpa [#allocation9], 0
    %s17 = scalar_lea.sflag [#allocation9], 1
    %18 = vsyncpa %s17, 0
    loop: start=0, step=1, limit=6
    $region2: #{tpu_custom_call.1} parent=1 // loop_pre_header
      _
    $region3: #{tpu_custom_call.1} parent=1 // loop_header
      %s20 = sphi 0, %s24
      %p21 = scmp.ge.s32.totalorder %s20, 6
      %s28 = sphi 0, %s28
      %s30 = sphi 0, %s28
      %s31 = sphi 0, %s30
      %s45 = sphi 0, %s31
      %s51 = sphi 0, %s53
      %s54 = sphi 0, %s51
      %s55 = sphi 0, %s54
      %s71 = sphi 0, %s55
      %s77 = sphi 0, %s79
      %s80 = sphi 0, %s77
      %s81 = sphi 0, %s80
      %s97 = sphi 0, %s81
      %s103 = sphi 0, %s105
      %s106 = sphi 0, %s103
      %s107 = sphi 0, %s106
      %s123 = sphi 0, %s107
    $region4: #{tpu_custom_call.1} parent=1 // loop_header_branch
      %23 = sbr.rel (%p21) target = $region8
    $region5: #{tpu_custom_call.1} parent=1 // loop_body
      %s25 = ssub.s32 %s20, 1
      %s26 = ssub.s32 %s20, 2
      %s27 = sadd.s32 %s20, 1
      %s29 = sadd.s32 %s28, 1
      %p32 = scmp.eq.s32.totalorder %s20, 3
      %p33 = scmp.ne.s32.totalorder %s28, %s30
      %p34 = scmp.eq.s32.totalorder %s20, 0
      %p35 = por %p33, %p34
      %p36 = scmp.ne.s32.totalorder %s28, %s30
      %p37 = scmp.eq.s32.totalorder %s25, 3
      %p38 = por %p36, %p37
      %p39 = scmp.ne.s32.totalorder %s30, %s31
      %p40 = scmp.eq.s32.totalorder %s25, 0
      %p41 = por %p39, %p40
      %p42 = scmp.ne.s32.totalorder %s30, %s31
      %p43 = scmp.eq.s32.totalorder %s26, 3
      %p44 = por %p42, %p43
      %p46 = scmp.ne.s32.totalorder %s31, %s45
      %p47 = scmp.eq.s32.totalorder %s26, 0
      %p48 = por %p46, %p47
      %s49 = ssub.s32 %s20, %s27
      %p50 = scmp.eq.s32.totalorder %s49, 0
      %s52 = sadd.s32 %s51, 1
      %s53 = scalar_select %p50, %s51, %s52
      %p56 = pneg %p50
      %p57 = scmp.eq.s32.totalorder %s20, 3
      %p58 = por %p56, %p57
      %p59 = scmp.ne.s32.totalorder %s51, %s54
      %p60 = scmp.eq.s32.totalorder %s20, 0
      %p61 = por %p59, %p60
      %p62 = scmp.ne.s32.totalorder %s51, %s54
      %p63 = scmp.eq.s32.totalorder %s25, 3
      %p64 = por %p62, %p63
      %p65 = scmp.ne.s32.totalorder %s54, %s55
      %p66 = scmp.eq.s32.totalorder %s25, 0
      %p67 = por %p65, %p66
      %p68 = scmp.ne.s32.totalorder %s54, %s55
      %p69 = scmp.eq.s32.totalorder %s26, 3
      %p70 = por %p68, %p69
      %p72 = scmp.ne.s32.totalorder %s55, %s71
      %p73 = scmp.eq.s32.totalorder %s26, 0
      %p74 = por %p72, %p73
      %s75 = ssub.s32 %s20, %s27
      %p76 = scmp.eq.s32.totalorder %s75, 0
      %s78 = sadd.s32 %s77, 1
      %s79 = scalar_select %p76, %s77, %s78
      %p82 = pneg %p76
      %p83 = scmp.eq.s32.totalorder %s20, 3
      %p84 = por %p82, %p83
      %p85 = scmp.ne.s32.totalorder %s77, %s80
      %p86 = scmp.eq.s32.totalorder %s20, 0
      %p87 = por %p85, %p86
      %p88 = scmp.ne.s32.totalorder %s77, %s80
      %p89 = scmp.eq.s32.totalorder %s25, 3
      %p90 = por %p88, %p89
      %p91 = scmp.ne.s32.totalorder %s80, %s81
      %p92 = scmp.eq.s32.totalorder %s25, 0
      %p93 = por %p91, %p92
      %p94 = scmp.ne.s32.totalorder %s80, %s81
      %p95 = scmp.eq.s32.totalorder %s26, 3
      %p96 = por %p94, %p95
      %p98 = scmp.ne.s32.totalorder %s81, %s97
      %p99 = scmp.eq.s32.totalorder %s26, 0
      %p100 = por %p98, %p99
      %s101 = ssub.s32 %s20, %s27
      %p102 = scmp.eq.s32.totalorder %s101, 0
      %s104 = sadd.s32 %s103, 1
      %s105 = scalar_select %p102, %s103, %s104
      %p108 = pneg %p102
      %p109 = scmp.eq.s32.totalorder %s20, 3
      %p110 = por %p108, %p109
      %p111 = scmp.ne.s32.totalorder %s103, %s106
      %p112 = scmp.eq.s32.totalorder %s20, 0
      %p113 = por %p111, %p112
      %p114 = scmp.ne.s32.totalorder %s103, %s106
      %p115 = scmp.eq.s32.totalorder %s25, 3
      %p116 = por %p114, %p115
      %p117 = scmp.ne.s32.totalorder %s106, %s107
      %p118 = scmp.eq.s32.totalorder %s25, 0
      %p119 = por %p117, %p118
      %p120 = scmp.ne.s32.totalorder %s106, %s107
      %p121 = scmp.eq.s32.totalorder %s26, 3
      %p122 = por %p120, %p121
      %p124 = scmp.ne.s32.totalorder %s107, %s123
      %p125 = scmp.eq.s32.totalorder %s26, 0
      %p126 = por %p124, %p125
      %p127 = scmp.le.s32.totalorder 1, %s20
      %p128 = scmp.lt.s32.totalorder %s20, 5
      %p129 = pnand %p127, %p128
      %p130 = pneg %p129
      // Predicated region
      $region9: #{tpu_custom_call.1} parent=5 // pred_check
        _
      $region10: #{tpu_custom_call.1} parent=5 // pred_check_branch
        %132 = sbr.rel (%p129) target = $region12
      $region11: #{tpu_custom_call.1} parent=5 // pred_region
        %s133 = ssub.s32 %s20, 1
        // Predicated region
        $region13: #{tpu_custom_call.1} parent=11 // pred_check
          %p134 = pneg %p41
        $region14: #{tpu_custom_call.1} parent=11 // pred_check_branch
          %136 = sbr.rel (%p134) target = $region16
        $region15: #{tpu_custom_call.1} parent=11 // pred_region
          %s138 = ssub.s32 64, 64
          %139 = vsyncadd [#allocation3], %s138
          %s141 = sshll.u32 [#allocation2], 4
          %s142 = int_to_ptr.vmem [resolvable:$true] %s141
          %144 = dma.hbm_to_vmem [thread:$0]  %s0, 64, %s142, [#allocation3]
        $region16: #{tpu_custom_call.1} parent=11 // pred_fallthru
          _
      $region12: #{tpu_custom_call.1} parent=5 // pred_fallthru
        _
      %p145 = scmp.lt.s32.totalorder %s20, 4
      // Predicated region
      $region17: #{tpu_custom_call.1} parent=5 // pred_check
        %p146 = pneg %p145
      $region18: #{tpu_custom_call.1} parent=5 // pred_check_branch
        %148 = sbr.rel (%p146) target = $region20
      $region19: #{tpu_custom_call.1} parent=5 // pred_region
        // Predicated region
        $region21: #{tpu_custom_call.1} parent=19 // pred_check
          %p149 = pneg %p61
        $region22: #{tpu_custom_call.1} parent=19 // pred_check_branch
          %151 = sbr.rel (%p149) target = $region24
        $region23: #{tpu_custom_call.1} parent=19 // pred_region
          %s152 = sand.u32 %s51, 1
          %s153 = scalar_lea.sflag [#allocation6], %s152
          %s154 = sand.u32 %s51, 1
          %s155 = smul.addr %s154, 20
          %s156 = scalar_lea.vmem [#allocation5], %s155
          %s158 = ssub.s32 320, 320
          %159 = vsyncadd %s153, %s158
          %s160 = smul.addr %s20, 64
          %s161 = scalar_lea.hbm %s1, %s160
          %s162 = sshll.u32 %s156, 4
          %s163 = int_to_ptr.vmem [resolvable:$true] %s162
          %168 = dma.hbm_to_vmem [thread:$0]  %s161, 320, %s163, %s153, 256, 64, 4
        $region24: #{tpu_custom_call.1} parent=19 // pred_fallthru
          _
      $region20: #{tpu_custom_call.1} parent=5 // pred_fallthru
        _
      %p169 = scmp.le.s32.totalorder 1, %s20
      %p170 = scmp.lt.s32.totalorder %s20, 5
      %p171 = pnand %p169, %p170
      %p172 = pneg %p171
      // Predicated region
      $region25: #{tpu_custom_call.1} parent=5 // pred_check
        _
      $region26: #{tpu_custom_call.1} parent=5 // pred_check_branch
        %174 = sbr.rel (%p171) target = $region28
      $region27: #{tpu_custom_call.1} parent=5 // pred_region
        %s175 = ssub.s32 %s20, 1
        // Predicated region
        $region29: #{tpu_custom_call.1} parent=27 // pred_check
          %p176 = pneg %p41
        $region30: #{tpu_custom_call.1} parent=27 // pred_check_branch
          %178 = sbr.rel (%p176) target = $region32
        $region31: #{tpu_custom_call.1} parent=27 // pred_region
          %179 = dma.done [#allocation3], 64
        $region32: #{tpu_custom_call.1} parent=27 // pred_fallthru
          _
        %s180 = sand.u32 %s54, 1
        %s181 = scalar_lea.sflag [#allocation6], %s180
        %s182 = sand.u32 %s54, 1
        %s183 = smul.addr %s182, 20
        %s184 = scalar_lea.vmem [#allocation5], %s183
        // Predicated region
        $region33: #{tpu_custom_call.1} parent=27 // pred_check
          %p185 = pneg %p67
        $region34: #{tpu_custom_call.1} parent=27 // pred_check_branch
          %187 = sbr.rel (%p185) target = $region36
        $region35: #{tpu_custom_call.1} parent=27 // pred_region
          %188 = dma.done %s181, 320
        $region36: #{tpu_custom_call.1} parent=27 // pred_fallthru
          _
        %p189 = pneg %p41
        %p190 = pneg %p38
        %s191 = sand.u32 %s54, 1
        %s192 = scalar_lea.sflag [#allocation6], %s191
        %s193 = sand.u32 %s54, 1
        %s194 = smul.addr %s193, 20
        %s195 = scalar_lea.vmem [#allocation5], %s194
        %p196 = pneg %p67
        %p197 = pneg %p64
        %p198 = pneg %p93
        %p199 = pneg %p90
        %s200 = sand.u32 %s80, 1
        %s201 = scalar_lea.sflag [#allocation4], %s200
        %s202 = sand.u32 %s80, 1
        %s203 = smul.addr %s202, 8
        %s204 = scalar_lea.vmem [#allocation7], %s203
        %p205 = pneg %p119
        %p206 = pneg %p116
        %s207 = sand.u32 %s106, 1
        %s208 = scalar_lea.sflag [#allocation9], %s207
        %s209 = sand.u32 %s106, 1
        %s210 = smul.addr %s209, 8
        %s211 = scalar_lea.vmem [#allocation8], %s210
        %v213 = vld [vmem:[#allocation2] sm:$0xf]
        %v214 = vld [vmem:[%s184] sm:$0xf]
        %v215 = vld [vmem:[%s184 + $0x4] sm:$0xf]
        %v216 = vld [vmem:[%s184 + $0x8] sm:$0xf]
        %v217 = vld [vmem:[%s184 + $0xc] sm:$0xf]
        %v218 = vld [vmem:[%s184 + $0x10] sm:$0xf]
        %v224 = vunpack.c.l.b16 %v214
        %v225 = vunpack.c.l.b16 %v215
        %v226 = vunpack.c.l.b16 %v216
        %v227 = vunpack.c.l.b16 %v217
        %v228 = vunpack.c.l.b16 %v218
        %v229 = vpack.c.b16 %v225, %v224
        %v230 = vpack.c.b16 %v227, %v226
        %v231 = vpack.c.b16 %v228, %v228
        %vm234 = vcmask 326656
        %v236 = vsel %vm234, %v213, 0
        %vm238 = vcmask 1043456
        %v240 = vsel %vm238, %v231, 0
        %242 = vmatprep.subr.bf16.mxu0 0
        %243 = vmatpush1.bf16.msra.mxu0 0
        %244 = vmatprep.subr.bf16.mxu0 0
        %245 = vmatpush1.bf16.msra.mxu0 0
        %246 = vmatprep.subr.bf16.mxu0 0
        %247 = vmatpush1.bf16.msra.mxu0 0
        %248 = vmatprep.subr.bf16.mxu0 0
        %249 = vmatpush1.bf16.msra.mxu0 0
        %250 = vmatprep.subr.bf16.mxu0 0
        %251 = vmatpush1.bf16.msra.mxu0 0
        %252 = vmatprep.subr.bf16.mxu0 0
        %253 = vmatpush1.bf16.msra.mxu0 %v240
        %254 = vmatprep.subr.bf16.mxu0 0
        %255 = vmatpush1.bf16.msra.mxu0 %v230
        %256 = vmatprep.subr.bf16.mxu0 0
        %257 = vmatpush1.bf16.msra.mxu0 %v229
        %258 = vmatprep.subr.bf16.mxu0 0
        %259 = vmatpush2.bf16.msra.mxu0 0
        %260 = vmatprep.subr.bf16.mxu0 0
        %261 = vmatpush2.bf16.msra.mxu0 0
        %262 = vmatprep.subr.bf16.mxu0 0
        %263 = vmatpush2.bf16.msra.mxu0 0
        %264 = vmatprep.subr.bf16.mxu0 0
        %265 = vmatpush2.bf16.msra.mxu0 0
        %266 = vmatprep.subr.bf16.mxu0 0
        %267 = vmatpush2.bf16.msra.mxu0 0
        %268 = vmatprep.subr.bf16.mxu0 0
        %269 = vmatpush2.bf16.msra.mxu0 0
        %270 = vmatprep.subr.bf16.mxu0 0
        %271 = vmatpush2.bf16.msra.mxu0 0
        %272 = vmatprep.subr.bf16.mxu0 0
        %273 = vmatpush2.bf16.msra.mxu0 0
        %274 = vmatprep.mubr.bf16.mxu0 0
        %275 = vmatmul.mubr.bf16.gmra.mxu0 %v236
        %v276 = vpop.f32.mrf.mxu0
        %v277 = vadd.f32 0.0, %v276
        %v278 = vpop.f32.mrf.mxu0
        %v279 = vpop.f32.mrf.mxu0
        %v280 = vpop.f32.mrf.mxu0
        %281 = vdwg.mxu0
        %282 = vst [vmem:[%s204] sm:$0xff] %v277
        %283 = vadd.xlane.f32.xlu0 %v277
        %v284 = vpop.xlane.xlu0 %283
        %v285 = vmul.f32 %v277, %v277
        %286 = vadd.xlane.f32.xlu0 %v285
        %v287 = vpop.xlane.xlu0 %286
        %v288 = vlaneseq
        %v289 = vand.u32 %v288, 127
        %vm290 = vcmp.eq.s32.totalorder %v289, 0
        %v291 = vsel %vm290, %v284, 0.0
        %vm292 = vcmp.eq.s32.totalorder %v289, 1
        %v293 = vsel %vm292, %v287, 0.0
        %v294 = vadd.f32 %v291, %v293
        %295 = vst [vmem:[%s211] sm:$0xff] %v294
        %s296 = sand.u32 %s80, 1
        %s297 = scalar_lea.sflag [#allocation4], %s296
        %s298 = sand.u32 %s80, 1
        %s299 = smul.addr %s298, 8
        %s300 = scalar_lea.vmem [#allocation7], %s299
        %s301 = sand.u32 %s106, 1
        %s302 = scalar_lea.sflag [#allocation9], %s301
        %s303 = sand.u32 %s106, 1
        %s304 = smul.addr %s303, 8
        %s305 = scalar_lea.vmem [#allocation8], %s304
        // Predicated region
        $region37: #{tpu_custom_call.1} parent=27 // pred_check
          %p306 = pneg %p90
        $region38: #{tpu_custom_call.1} parent=27 // pred_check_branch
          %308 = sbr.rel (%p306) target = $region40
        $region39: #{tpu_custom_call.1} parent=27 // pred_region
          %s310 = ssub.s32 128, 128
          %311 = vsyncadd %s297, %s310
          %s312 = smul.addr %s25, 128
          %s313 = scalar_lea.hbm %s2, %s312
          %s315 = sshll.u32 %s300, 4
          %s316 = int_to_ptr.vmem [resolvable:$true] %s315
          %318 = dma.vmem_to_hbm [thread:$0]  %s316, 128, %s313, %s297
        $region40: #{tpu_custom_call.1} parent=27 // pred_fallthru
          _
        // Predicated region
        $region41: #{tpu_custom_call.1} parent=27 // pred_check
          %p319 = pneg %p116
        $region42: #{tpu_custom_call.1} parent=27 // pred_check_branch
          %321 = sbr.rel (%p319) target = $region44
        $region43: #{tpu_custom_call.1} parent=27 // pred_region
          %s323 = ssub.s32 128, 128
          %324 = vsyncadd %s302, %s323
          %s325 = smul.addr %s25, 128
          %s326 = scalar_lea.hbm %s3, %s325
          %s328 = sshll.u32 %s305, 4
          %s329 = int_to_ptr.vmem [resolvable:$true] %s328
          %331 = dma.vmem_to_hbm [thread:$0]  %s329, 128, %s326, %s302
        $region44: #{tpu_custom_call.1} parent=27 // pred_fallthru
          _
      $region28: #{tpu_custom_call.1} parent=5 // pred_fallthru
        _
      %p332 = scmp.le.s32.totalorder 2, %s20
      // Predicated region
      $region45: #{tpu_custom_call.1} parent=5 // pred_check
        %p333 = pneg %p332
      $region46: #{tpu_custom_call.1} parent=5 // pred_check_branch
        %335 = sbr.rel (%p333) target = $region48
      $region47: #{tpu_custom_call.1} parent=5 // pred_region
        %s336 = ssub.s32 %s20, 2
        // Predicated region
        $region49: #{tpu_custom_call.1} parent=47 // pred_check
          %p337 = pneg %p96
        $region50: #{tpu_custom_call.1} parent=47 // pred_check_branch
          %339 = sbr.rel (%p337) target = $region52
        $region51: #{tpu_custom_call.1} parent=47 // pred_region
          %s340 = sand.u32 %s81, 1
          %s341 = scalar_lea.sflag [#allocation4], %s340
          %s342 = sand.u32 %s81, 1
          %s343 = smul.addr %s342, 8
          %s344 = scalar_lea.vmem [#allocation7], %s343
          %345 = dma.done %s341, 128
        $region52: #{tpu_custom_call.1} parent=47 // pred_fallthru
          _
        // Predicated region
        $region53: #{tpu_custom_call.1} parent=47 // pred_check
          %p346 = pneg %p122
        $region54: #{tpu_custom_call.1} parent=47 // pred_check_branch
          %348 = sbr.rel (%p346) target = $region56
        $region55: #{tpu_custom_call.1} parent=47 // pred_region
          %s349 = sand.u32 %s107, 1
          %s350 = scalar_lea.sflag [#allocation9], %s349
          %s351 = sand.u32 %s107, 1
          %s352 = smul.addr %s351, 8
          %s353 = scalar_lea.vmem [#allocation8], %s352
          %354 = dma.done %s350, 128
        $region56: #{tpu_custom_call.1} parent=47 // pred_fallthru
          _
      $region48: #{tpu_custom_call.1} parent=5 // pred_fallthru
        _
    $region6: #{tpu_custom_call.1} parent=1 // loop_footer
      %s24 = sadd.s32 1, %s20
    $region7: #{tpu_custom_call.1} parent=1 // loop_footer_branch
      %19 = sbr.rel target = $region3
    $region8: #{tpu_custom_call.1} parent=1 // loop_exit
      _
    %355 = vsyncpa [#allocation3], 1
    %s356 = scalar_lea.sflag [#allocation3], 1
    %357 = vsyncpa %s356, 1
    %358 = vsyncpa [#allocation6], 1
    %s359 = scalar_lea.sflag [#allocation6], 1
    %360 = vsyncpa %s359, 1
    %361 = vsyncpa [#allocation4], 1
    %s362 = scalar_lea.sflag [#allocation4], 1
    %363 = vsyncpa %s362, 1
    %364 = vsyncpa [#allocation9], 1
    %s365 = scalar_lea.sflag [#allocation9], 1
    %366 = vsyncpa %s365, 1

</llo_original>
